<compile_context>
chip_gen: v6e
topology: v6e:2x2x1
jax: 0.10.0
libtpu: 0.0.40
codegen_flags: <defaults>
</compile_context>

<pallas_src>
import functools

import jax
import jax.numpy as jnp
from jax.experimental import pallas as pl
from jax.experimental.pallas import tpu as pltpu

EPS = 1e-8
ONE_MINUS_EPS = 1.0 - 2.0 ** -24  # largest float32 strictly below 1.0


def _round_up(n, m):
    return (n + m - 1) // m * m


def _relaxed_bernoulli_kernel(x_ref, w_ref, b_ref, u_ref, z_ref, la_ref, *,
                              inv_lamb, training_mode):
    # --- linear: log_alpha = x @ W^T + b  (MXU) ---
    log_alpha = jnp.dot(x_ref[...], w_ref[...],
                        preferred_element_type=jnp.float32) + b_ref[...]
    la_ref[...] = log_alpha.astype(la_ref.dtype)

    # --- reparametrize with pre-generated uniform noise u in [0, 1) ---
    u = jnp.clip(u_ref[...], EPS, ONE_MINUS_EPS)
    logit_u = jnp.log(u / (1.0 - u))          # single EUP log instead of two
    z = (log_alpha + logit_u) * inv_lamb

    if training_mode:
        # soft (relaxed) sample
        z_ref[...] = jax.nn.sigmoid(z).astype(z_ref.dtype)
    else:
        # hard sample: sigmoid(z) > 0.5  <=>  z > 0  -> skip the sigmoid in eval
        z_ref[...] = (z > 0.0).astype(z_ref.dtype)


def _pick_tile_m(B, D_in, D_out_pad, budget_bytes=8 * 1024 * 1024):
    """Batch-tile rows sized to keep double-buffered tiles well inside scoped
    VMEM on all of v5e / v6e / v7x (weight stays resident on top of this)."""
    bytes_per_row = 4 * 2 * (D_in + 3 * D_out_pad)  # f32, double-buffered
    tm = max(8, budget_bytes // max(1, bytes_per_row))
    tm = min(tm, 1024, B)
    if tm < B:
        tm = max(8, (tm // 8) * 8)  # sublane-aligned for non-full blocks
    return tm


def relaxed_bernoulli_sample(x, w_t, bias, u, *, lamb, training_mode):
    """x: (B, D_in) f32; w_t: (D_in, D_out) f32 (nn.Linear weight pre-transposed
    once at setup); bias: (D_out,) f32; u: (B, D_out) uniform [0,1) noise."""
    x = x.astype(jnp.float32)
    B, D_in = x.shape
    D_out = w_t.shape[1]

    # Lane-dense output stores: pad D_out to a multiple of 128, slice afterwards.
    D_out_pad = _round_up(D_out, 128)
    if D_out_pad != D_out:
        w_t = jnp.pad(w_t, ((0, 0), (0, D_out_pad - D_out)))
        bias = jnp.pad(bias, (0, D_out_pad - D_out))
        u = jnp.pad(u, ((0, 0), (0, D_out_pad - D_out)), constant_values=0.5)
    b2d = bias.reshape(1, D_out_pad).astype(jnp.float32)

    tm = _pick_tile_m(B, D_in, D_out_pad)
    grid = (pl.cdiv(B, tm),)

    kernel = functools.partial(_relaxed_bernoulli_kernel,
                               inv_lamb=1.0 / float(lamb),
                               training_mode=bool(training_mode))

    z_sample, log_alpha = pl.pallas_call(
        kernel,
        grid=grid,
        out_shape=(jax.ShapeDtypeStruct((B, D_out_pad), jnp.float32),
                   jax.ShapeDtypeStruct((B, D_out_pad), jnp.float32)),
        in_specs=[
            pl.BlockSpec((tm, D_in), lambda i: (i, 0)),          # x tile
            pl.BlockSpec((D_in, D_out_pad), lambda i: (0, 0)),   # W^T resident
            pl.BlockSpec((1, D_out_pad), lambda i: (0, 0)),      # bias resident
            pl.BlockSpec((tm, D_out_pad), lambda i: (i, 0)),     # noise tile
        ],
        out_specs=(pl.BlockSpec((tm, D_out_pad), lambda i: (i, 0)),
                   pl.BlockSpec((tm, D_out_pad), lambda i: (i, 0))),
        compiler_params=pltpu.CompilerParams(
            dimension_semantics=("parallel",)),
    )(x, w_t.astype(jnp.float32), b2d, u.astype(jnp.float32))

    if D_out_pad != D_out:
        z_sample = z_sample[:, :D_out]
        log_alpha = log_alpha[:, :D_out]
    return z_sample, log_alpha


if __name__ == "__main__":
    # Small, deterministic setup matching the module: nn.Linear(input_dim, output_dim).
    B, INPUT_DIM, OUTPUT_DIM = 8, 32, 128
    LAMB = 0.5

    key = jax.random.PRNGKey(0)
    kx, kw, kb, ku = jax.random.split(key, 4)
    x = jax.random.normal(kx, (B, INPUT_DIM), dtype=jnp.float32)
    bound = 1.0 / (INPUT_DIM ** 0.5)
    weight = jax.random.uniform(kw, (OUTPUT_DIM, INPUT_DIM),
                                minval=-bound, maxval=bound, dtype=jnp.float32)
    bias = jax.random.uniform(kb, (OUTPUT_DIM,),
                              minval=-bound, maxval=bound, dtype=jnp.float32)
    # Pre-transpose the weight ONCE at setup (no per-call HBM round trip).
    w_t = jnp.asarray(weight.T)

    # Uniform noise, same role as torch.rand in the reference module.
    u = jax.random.uniform(ku, (B, OUTPUT_DIM), dtype=jnp.float32)

    # Training mode: relaxed (soft) samples.
    z_train, la_train = relaxed_bernoulli_sample(
        x, w_t, bias, u, lamb=LAMB, training_mode=True)
    # Eval mode: hard {0,1} samples (same noise).
    z_eval, la_eval = relaxed_bernoulli_sample(
        x, w_t, bias, u, lamb=LAMB, training_mode=False)

    jax.block_until_ready((z_train, la_train, z_eval, la_eval))

    # Sanity checks on semantics.
    assert z_train.shape == (B, OUTPUT_DIM) and la_train.shape == (B, OUTPUT_DIM)
    assert bool(jnp.all((z_train >= 0.0) & (z_train <= 1.0)))
    assert bool(jnp.all((z_eval == 0.0) | (z_eval == 1.0)))
    # log_alpha must match a plain-JAX linear layer.
    la_ref = x @ weight.T + bias
    assert bool(jnp.allclose(la_train, la_ref, atol=1e-5, rtol=1e-5))

    print("KERNEL_OK")
</pallas_src>

<mosaic_0001>
module attributes {stable_mosaic.version = 11 : i64} {
  func.func @_relaxed_bernoulli_kernel(%arg0: i32, %arg1: memref<8x32xf32, #tpu.memory_space<vmem>>, %arg2: memref<32x128xf32, #tpu.memory_space<vmem>>, %arg3: memref<1x128xf32, #tpu.memory_space<vmem>>, %arg4: memref<8x128xf32, #tpu.memory_space<vmem>>, %arg5: memref<8x128xf32, #tpu.memory_space<vmem>>, %arg6: memref<8x128xf32, #tpu.memory_space<vmem>>) attributes {dimension_semantics = [#tpu.dimension_semantics<parallel>], iteration_bounds = array<i64: 1>, scalar_prefetch = 0 : i64, scratch_operands = 0 : i64, tpu.core_type = #tpu.core_type<tc>, window_params = [{transform_indices = @transform_0, window_bounds = array<i64: 8, 32>}, {pipeline_mode = #tpu.pipeline_mode<synchronous>, transform_indices = @transform_1, window_bounds = array<i64: 32, 128>}, {pipeline_mode = #tpu.pipeline_mode<synchronous>, transform_indices = @transform_2, window_bounds = array<i64: 1, 128>}, {transform_indices = @transform_3, window_bounds = array<i64: 8, 128>}, {transform_indices = @transform_4, window_bounds = array<i64: 8, 128>}, {transform_indices = @transform_5, window_bounds = array<i64: 8, 128>}]} {
    %c0 = arith.constant 0 : index
    %c0_0 = arith.constant 0 : index
    %0 = vector.load %arg1[%c0, %c0_0] : memref<8x32xf32, #tpu.memory_space<vmem>>, vector<8x32xf32>
    %c0_1 = arith.constant 0 : index
    %c0_2 = arith.constant 0 : index
    %1 = vector.load %arg2[%c0_1, %c0_2] : memref<32x128xf32, #tpu.memory_space<vmem>>, vector<32x128xf32>
    %cst = arith.constant dense<0.000000e+00> : vector<8x128xf32>
    %2 = tpu.matmul %0, %1, %cst {dimension_numbers = #tpu.dot_dimension_numbers<[1], [0], [0], [1], [0, 0, 1, 1], [], []>} : vector<8x32xf32>, vector<32x128xf32>, vector<8x128xf32> -> vector<8x128xf32>
    %c0_3 = arith.constant 0 : index
    %c0_4 = arith.constant 0 : index
    %3 = vector.load %arg3[%c0_3, %c0_4] : memref<1x128xf32, #tpu.memory_space<vmem>>, vector<1x128xf32>
    %4 = vector.broadcast %3 : vector<1x128xf32> to vector<8x128xf32>
    %5 = arith.addf %2, %4 : vector<8x128xf32>
    %c0_5 = arith.constant 0 : index
    %c0_6 = arith.constant 0 : index
    %6 = vector.load %arg6[%c0_5, %c0_6] : memref<8x128xf32, #tpu.memory_space<vmem>>, vector<8x128xf32>
    tpu.vector_store %arg6[%c0_5, %c0_6], %5 {strides = array<i32>} : memref<8x128xf32, #tpu.memory_space<vmem>>, vector<8x128xf32>,
    %c0_7 = arith.constant 0 : index
    %c0_8 = arith.constant 0 : index
    %7 = vector.load %arg4[%c0_7, %c0_8] : memref<8x128xf32, #tpu.memory_space<vmem>>, vector<8x128xf32>
    %cst_9 = arith.constant 9.99999993E-9 : f32
    %cst_10 = arith.constant 0.99999994 : f32
    %8 = vector.broadcast %cst_9 : f32 to vector<8x128xf32>
    %9 = arith.maximumf %8, %7 : vector<8x128xf32>
    %10 = vector.broadcast %cst_10 : f32 to vector<8x128xf32>
    %11 = arith.minimumf %10, %9 : vector<8x128xf32>
    %cst_11 = arith.constant 1.000000e+00 : f32
    %12 = vector.broadcast %cst_11 : f32 to vector<8x128xf32>
    %13 = arith.subf %12, %11 : vector<8x128xf32>
    %14 = arith.divf %11, %13 : vector<8x128xf32>
    %15 = math.log %14 : vector<8x128xf32>
    %16 = arith.addf %5, %15 : vector<8x128xf32>
    %cst_12 = arith.constant 2.000000e+00 : f32
    %17 = vector.broadcast %cst_12 : f32 to vector<8x128xf32>
    %18 = arith.mulf %16, %17 : vector<8x128xf32>
    %19 = arith.negf %18 : vector<8x128xf32>
    %20 = math.exp %19 : vector<8x128xf32>
    %cst_13 = arith.constant 1.000000e+00 : f32
    %21 = vector.broadcast %cst_13 : f32 to vector<8x128xf32>
    %22 = arith.addf %21, %20 : vector<8x128xf32>
    %23 = arith.divf %21, %22 : vector<8x128xf32>
    %c0_14 = arith.constant 0 : index
    %c0_15 = arith.constant 0 : index
    %24 = vector.load %arg5[%c0_14, %c0_15] : memref<8x128xf32, #tpu.memory_space<vmem>>, vector<8x128xf32>
    tpu.vector_store %arg5[%c0_14, %c0_15], %23 {strides = array<i32>} : memref<8x128xf32, #tpu.memory_space<vmem>>, vector<8x128xf32>,
    return
  }
  func.func @transform_0(%arg0: i32) -> (i32, i32) {
    %c0_i32 = arith.constant 0 : i32
    %c0_i32_0 = arith.constant 0 : i32
    return %arg0, %c0_i32 : i32, i32
  }
  func.func @transform_1(%arg0: i32) -> (i32, i32) {
    %c0_i32 = arith.constant 0 : i32
    %c0_i32_0 = arith.constant 0 : i32
    %c0_i32_1 = arith.constant 0 : i32
    return %c0_i32, %c0_i32_0 : i32, i32
  }
  func.func @transform_2(%arg0: i32) -> (i32, i32) {
    %c0_i32 = arith.constant 0 : i32
    %c0_i32_0 = arith.constant 0 : i32
    %c0_i32_1 = arith.constant 0 : i32
    return %c0_i32, %c0_i32_0 : i32, i32
  }
  func.func @transform_3(%arg0: i32) -> (i32, i32) {
    %c0_i32 = arith.constant 0 : i32
    %c0_i32_0 = arith.constant 0 : i32
    return %arg0, %c0_i32 : i32, i32
  }
  func.func @transform_4(%arg0: i32) -> (i32, i32) {
    %c0_i32 = arith.constant 0 : i32
    %c0_i32_0 = arith.constant 0 : i32
    return %arg0, %c0_i32 : i32, i32
  }
  func.func @transform_5(%arg0: i32) -> (i32, i32) {
    %c0_i32 = arith.constant 0 : i32
    %c0_i32_0 = arith.constant 0 : i32
    return %arg0, %c0_i32 : i32, i32
  }
}

</mosaic_0001>

<llo_original>
// kernel: tpu_custom_call.1
$region0: #{tpu_custom_call.1}
  #allocation0 [shape = 'u32[]', space=smem, size = 0x4, offset = 0x4, fixed_abs, tag = 'smem constant byte address 0x4 - core index']
  #allocation1 [shape = 'u32[144,128]{1,0:T(1,128)}', space=vmem, size = 0x12000, scoped, tag = 'internal scratch']
  %s0 = inlined_call_operand.hbm [shape: f32[8,32], index: 0, kind: input, shape index: {}]
  %s1 = inlined_call_operand.hbm [shape: f32[32,128], index: 1, kind: input, shape index: {}]
  %s2 = inlined_call_operand.vmem [shape: f32[1,128], index: 2, kind: input, shape index: {}]
  %s3 = inlined_call_operand.hbm [shape: f32[8,128], index: 3, kind: input, shape index: {}]
  %s4 = inlined_call_operand.hbm [shape: f32[8,128], index: 4, kind: output, shape index: {0}]
  %s5 = inlined_call_operand.hbm [shape: f32[8,128], index: 5, kind: output, shape index: {1}]
  %6 = xla_tuple %s4, %s5
  %s7 = sld [smem:[#allocation0]]
  $region46: #{tpu_custom_call.1} parent=0
    _
  %s9 = ssub.s32 1, %s7
  %s10 = scalar_select 0, %s9, %s7
  $region1: #{tpu_custom_call.1} parent=0
    #allocation2 [shape = 'u8[4096]{0}', space=vmem, size = 0x1000, scoped, tag = 'input window, operand 0, single buffered']
    #allocation3 [shape = 's32[1]{0}', space=sflag, size = 0x4, scoped, tag = 'scoped memory for tpu_custom_call.1']
    #allocation4 [shape = 's32[1]{0}', space=sflag, size = 0x4, scoped, tag = 'scoped memory for tpu_custom_call.1']
    #allocation5 [shape = 'u8[16384]{0}', space=vmem, size = 0x4000, scoped, tag = 'input window, operand 1, single buffered']
    #allocation6 [shape = 's32[1]{0}', space=sflag, size = 0x4, scoped, tag = 'scoped memory for tpu_custom_call.1']
    #allocation7 [shape = 'u8[4096]{0}', space=vmem, size = 0x1000, scoped, tag = 'input window, operand 3, single buffered']
    #allocation8 [shape = 'u8[4096]{0}', space=vmem, size = 0x1000, scoped, tag = 'output window, operand 0, single buffered']
    #allocation9 [shape = 'u8[4096]{0}', space=vmem, size = 0x1000, scoped, tag = 'output window, operand 1, single buffered']
    #allocation10 [shape = 's32[1]{0}', space=sflag, size = 0x4, scoped, tag = 'scoped memory for tpu_custom_call.1']
    %11 = vsyncpa [#allocation3], 0
    %12 = vsyncpa [#allocation6], 0
    %13 = vsyncpa [#allocation4], 0
    %14 = vsyncpa [#allocation10], 0
    // Predicated region
    $region2: #{tpu_custom_call.1} parent=1 // pred_check
      _
    $region3: #{tpu_custom_call.1} parent=1 // pred_check_branch
      %16 = sbr.rel (0) target = $region5
    $region4: #{tpu_custom_call.1} parent=1 // pred_region
      %s18 = ssub.s32 128, 128
      %19 = vsyncadd [#allocation3], %s18
      %s21 = sshll.u32 [#allocation2], 4
      %s22 = int_to_ptr.vmem [resolvable:$true] %s21
      %24 = dma.hbm_to_vmem [thread:$0]  %s0, 128, %s22, [#allocation3]
    $region5: #{tpu_custom_call.1} parent=1 // pred_fallthru
      _
    // Predicated region
    $region6: #{tpu_custom_call.1} parent=1 // pred_check
      _
    $region7: #{tpu_custom_call.1} parent=1 // pred_check_branch
      %26 = sbr.rel (0) target = $region9
    $region8: #{tpu_custom_call.1} parent=1 // pred_region
      %s28 = ssub.s32 512, 512
      %29 = vsyncadd [#allocation6], %s28
      %s30 = sshll.u32 [#allocation5], 4
      %s31 = int_to_ptr.vmem [resolvable:$true] %s30
      %36 = dma.hbm_to_vmem [thread:$0]  %s1, 512, %s31, [#allocation6], 128, 128, 8
    $region9: #{tpu_custom_call.1} parent=1 // pred_fallthru
      _
    // Predicated region
    $region10: #{tpu_custom_call.1} parent=1 // pred_check
      _
    $region11: #{tpu_custom_call.1} parent=1 // pred_check_branch
      %38 = sbr.rel (0) target = $region13
    $region12: #{tpu_custom_call.1} parent=1 // pred_region
      _
    $region13: #{tpu_custom_call.1} parent=1 // pred_fallthru
      _
    // Predicated region
    $region14: #{tpu_custom_call.1} parent=1 // pred_check
      _
    $region15: #{tpu_custom_call.1} parent=1 // pred_check_branch
      %40 = sbr.rel (0) target = $region17
    $region16: #{tpu_custom_call.1} parent=1 // pred_region
      %s42 = ssub.s32 128, 128
      %43 = vsyncadd [#allocation6], %s42
      %s45 = sshll.u32 [#allocation7], 4
      %s46 = int_to_ptr.vmem [resolvable:$true] %s45
      %48 = dma.hbm_to_vmem [thread:$0]  %s3, 128, %s46, [#allocation6]
    $region17: #{tpu_custom_call.1} parent=1 // pred_fallthru
      _
    // Predicated region
    $region18: #{tpu_custom_call.1} parent=1 // pred_check
      _
    $region19: #{tpu_custom_call.1} parent=1 // pred_check_branch
      %50 = sbr.rel (0) target = $region21
    $region20: #{tpu_custom_call.1} parent=1 // pred_region
      %51 = dma.done [#allocation3], 128
    $region21: #{tpu_custom_call.1} parent=1 // pred_fallthru
      _
    // Predicated region
    $region22: #{tpu_custom_call.1} parent=1 // pred_check
      _
    $region23: #{tpu_custom_call.1} parent=1 // pred_check_branch
      %53 = sbr.rel (0) target = $region25
    $region24: #{tpu_custom_call.1} parent=1 // pred_region
      %54 = dma.done [#allocation6], 512
    $region25: #{tpu_custom_call.1} parent=1 // pred_fallthru
      _
    // Predicated region
    $region26: #{tpu_custom_call.1} parent=1 // pred_check
      _
    $region27: #{tpu_custom_call.1} parent=1 // pred_check_branch
      %56 = sbr.rel (0) target = $region29
    $region28: #{tpu_custom_call.1} parent=1 // pred_region
      %57 = dma.done [#allocation6], 128
    $region29: #{tpu_custom_call.1} parent=1 // pred_fallthru
      _
    %v58 = vld [vmem:[#allocation2] sm:$0xff]
    %v59 = vld [vmem:[#allocation5] sm:$0xff]
    %v60 = vld [vmem:[#allocation5 + $0x8] sm:$0xff]
    %v61 = vld [vmem:[#allocation5 + $0x10] sm:$0xff]
    %v62 = vld [vmem:[#allocation5 + $0x18] sm:$0xff]
    %v63 = vld [vmem:[%s2] sm:$0x1]
    %v65 = vlaneseq
    %v66 = vshrl.u32 %v65, 7
    %v67 = vsub.s32 0, %v66
    %v68 = vrot.slane %v63, %v67
    %vm70 = vcmask 261120
    %v72 = vsel %vm70, %v58, 0
    %74 = vmatprep.subr.mxu0 0.0
    %75 = vmatpush1.msra.mxu0 0.0
    %76 = vmatprep.subr.mxu0 0.0
    %77 = vmatpush1.msra.mxu0 0.0
    %78 = vmatprep.subr.mxu0 0.0
    %79 = vmatpush1.msra.mxu0 0.0
    %80 = vmatprep.subr.mxu0 0.0
    %81 = vmatpush1.msra.mxu0 0.0
    %82 = vmatprep.subr.mxu0 0.0
    %83 = vmatpush1.msra.mxu0 0.0
    %84 = vmatprep.subr.mxu0 0.0
    %85 = vmatpush1.msra.mxu0 0.0
    %86 = vmatprep.subr.mxu0 0.0
    %87 = vmatpush1.msra.mxu0 0.0
    %88 = vmatprep.subr.mxu0 0.0
    %89 = vmatpush1.msra.mxu0 0.0
    %90 = vmatprep.subr.mxu0 0.0
    %91 = vmatpush1.msra.mxu0 0.0
    %92 = vmatprep.subr.mxu0 0.0
    %93 = vmatpush1.msra.mxu0 0.0
    %94 = vmatprep.subr.mxu0 0.0
    %95 = vmatpush1.msra.mxu0 0.0
    %96 = vmatprep.subr.mxu0 0.0
    %97 = vmatpush1.msra.mxu0 0.0
    %98 = vmatprep.subr.mxu0 0.0
    %99 = vmatpush1.msra.mxu0 %v62
    %100 = vmatprep.subr.mxu0 0.0
    %101 = vmatpush1.msra.mxu0 %v61
    %102 = vmatprep.subr.mxu0 0.0
    %103 = vmatpush1.msra.mxu0 %v60
    %104 = vmatprep.subr.mxu0 0.0
    %105 = vmatpush1.msra.mxu0 %v59
    %106 = vmatprep.subr.mxu0 0.0
    %107 = vmatpush2.msra.mxu0 0.0
    %108 = vmatprep.subr.mxu0 0.0
    %109 = vmatpush2.msra.mxu0 0.0
    %110 = vmatprep.subr.mxu0 0.0
    %111 = vmatpush2.msra.mxu0 0.0
    %112 = vmatprep.subr.mxu0 0.0
    %113 = vmatpush2.msra.mxu0 0.0
    %114 = vmatprep.subr.mxu0 0.0
    %115 = vmatpush2.msra.mxu0 0.0
    %116 = vmatprep.subr.mxu0 0.0
    %117 = vmatpush2.msra.mxu0 0.0
    %118 = vmatprep.subr.mxu0 0.0
    %119 = vmatpush2.msra.mxu0 0.0
    %120 = vmatprep.subr.mxu0 0.0
    %121 = vmatpush2.msra.mxu0 0.0
    %122 = vmatprep.subr.mxu0 0.0
    %123 = vmatpush2.msra.mxu0 0.0
    %124 = vmatprep.subr.mxu0 0.0
    %125 = vmatpush2.msra.mxu0 0.0
    %126 = vmatprep.subr.mxu0 0.0
    %127 = vmatpush2.msra.mxu0 0.0
    %128 = vmatprep.subr.mxu0 0.0
    %129 = vmatpush2.msra.mxu0 0.0
    %130 = vmatprep.subr.mxu0 0.0
    %131 = vmatpush2.msra.mxu0 0.0
    %132 = vmatprep.subr.mxu0 0.0
    %133 = vmatpush2.msra.mxu0 0.0
    %134 = vmatprep.subr.mxu0 0.0
    %135 = vmatpush2.msra.mxu0 0.0
    %136 = vmatprep.subr.mxu0 0.0
    %137 = vmatpush2.msra.mxu0 0.0
    %138 = vmatprep.mubr.f32.mxu0 0.0
    %139 = vmatmul.mubr.f32.gmra.mxu0 %v72
    %v140 = vpop.f32.mrf.mxu0
    %v141 = vadd.f32 %v68, %v140
    %v142 = vpop.f32.mrf.mxu0
    %143 = vdwg.mxu0
    %144 = vst [vmem:[#allocation9] sm:$0xff] %v141
    %v145 = vld [vmem:[#allocation7] sm:$0xff]
    %v146 = vmax.f32 %v145, 1e-08
    %v147 = vmin.f32 %v146, 0.99999994
    %v148 = vsub.f32 1.0, %v147
    %v149 = vrcp.pop %v148
    %v150 = vmul.f32 %v147, %v149
    %v151 = vlog2.pop %v150
    %v152 = vmul.f32 %v151, 0.6931472
    %v153 = vadd.f32 %v141, %v152
    %v154 = vmul.f32 %v153, 2.0
    %v155 = vxor.u32 %v154, 2147483648
    %v156 = vmul.f32 %v155, 1.442695
    %v157 = vpow.pop %v156
    %v158 = vadd.f32 %v157, 1.0
    %v159 = vrcp.pop %v158
    %v160 = vmul.f32 1.0, %v159
    %161 = vst [vmem:[#allocation8] sm:$0xff] %v160
    // Predicated region
    $region30: #{tpu_custom_call.1} parent=1 // pred_check
      _
    $region31: #{tpu_custom_call.1} parent=1 // pred_check_branch
      %163 = sbr.rel (0) target = $region33
    $region32: #{tpu_custom_call.1} parent=1 // pred_region
      %s165 = ssub.s32 128, 128
      %166 = vsyncadd [#allocation4], %s165
      %s168 = sshll.u32 [#allocation8], 4
      %s169 = int_to_ptr.vmem [resolvable:$true] %s168
      %171 = dma.vmem_to_hbm [thread:$0]  %s169, 128, %s4, [#allocation4]
    $region33: #{tpu_custom_call.1} parent=1 // pred_fallthru
      _
    // Predicated region
    $region34: #{tpu_custom_call.1} parent=1 // pred_check
      _
    $region35: #{tpu_custom_call.1} parent=1 // pred_check_branch
      %173 = sbr.rel (0) target = $region37
    $region36: #{tpu_custom_call.1} parent=1 // pred_region
      %s175 = ssub.s32 128, 128
      %176 = vsyncadd [#allocation10], %s175
      %s178 = sshll.u32 [#allocation9], 4
      %s179 = int_to_ptr.vmem [resolvable:$true] %s178
      %181 = dma.vmem_to_hbm [thread:$0]  %s179, 128, %s5, [#allocation10]
    $region37: #{tpu_custom_call.1} parent=1 // pred_fallthru
      _
    // Predicated region
    $region38: #{tpu_custom_call.1} parent=1 // pred_check
      _
    $region39: #{tpu_custom_call.1} parent=1 // pred_check_branch
      %183 = sbr.rel (0) target = $region41
    $region40: #{tpu_custom_call.1} parent=1 // pred_region
      %184 = dma.done [#allocation4], 128
    $region41: #{tpu_custom_call.1} parent=1 // pred_fallthru
      _
    // Predicated region
    $region42: #{tpu_custom_call.1} parent=1 // pred_check
      _
    $region43: #{tpu_custom_call.1} parent=1 // pred_check_branch
      %186 = sbr.rel (0) target = $region45
    $region44: #{tpu_custom_call.1} parent=1 // pred_region
      %187 = dma.done [#allocation10], 128
    $region45: #{tpu_custom_call.1} parent=1 // pred_fallthru
      _
    %188 = vsyncpa [#allocation3], 1
    %189 = vsyncpa [#allocation6], 1
    %190 = vsyncpa [#allocation4], 1
    %191 = vsyncpa [#allocation10], 1

</llo_original>
